<compile_context>
chip_gen: v5e
topology: v5e:2x2
jax: 0.10.0
libtpu: 0.0.40
codegen_flags: <defaults>
</compile_context>

<pallas_src>
import functools

import jax
import jax.numpy as jnp
import numpy as np
from jax import lax
from jax.experimental import pallas as pl
from jax.experimental.pallas import tpu as pltpu


# ---------------------------------------------------------------------------
# Hardware-aware sizing helpers
# ---------------------------------------------------------------------------

def _vmem_capacity_bytes():
    """Best-effort VMEM capacity query; conservative 64 MiB fallback."""
    try:
        info = pltpu.get_tpu_info()
        for attr in ("vmem_capacity_bytes", "vmem_bytes", "vmem_size_bytes"):
            v = getattr(info, attr, None)
            if v:
                return int(v)
    except Exception:
        pass
    return 64 * 1024 * 1024


def _choose_bb(B, cap_bb):
    """Largest divisor of B <= cap_bb, preferring even / deep grids (v7x)."""
    divs = [d for d in range(1, B + 1) if B % d == 0 and d <= cap_bb]
    if not divs:
        return 1
    for pred in (lambda s: s >= 8 and s % 2 == 0,
                 lambda s: s >= 2 and s % 2 == 0,
                 lambda s: s >= 2,
                 lambda s: True):
        cands = [d for d in divs if pred(B // d)]
        if cands:
            return max(cands)
    return 1


def _choose_tt(T, max_rows):
    """Largest layout-friendly divisor of T (multiple of 8 or T) <= max_rows."""
    divs = [d for d in range(1, T + 1) if T % d == 0]
    good = [d for d in divs if d % 8 == 0 or d == T]
    in_budget = [d for d in good if d <= max_rows]
    if in_budget:
        return max(in_budget)
    if good:
        return min(good)          # may exceed the budget but keeps layout legal
    in_budget_any = [d for d in divs if d <= max_rows]
    return max(in_budget_any) if in_budget_any else T


# ---------------------------------------------------------------------------
# Single-pass kernel: whole (bb, T, C) plane per grid step
# ---------------------------------------------------------------------------

def _ln_singlepass_kernel(*refs, eps, noise, has_err, emit_hi):
    if has_err:
        x_ref, e_ref, w_ref, b_ref = refs[:4]
        out = refs[4:]
    else:
        x_ref, w_ref, b_ref = refs[:3]
        out = refs[3:]
    if emit_hi:
        y_ref, lo_ref, hi_ref = out
    else:
        (y_ref, lo_ref), hi_ref = out, None

    x = x_ref[...].astype(jnp.float32)                 # (bb, T, C)
    wv = w_ref[...].astype(jnp.float32)[None]          # (1, 1, C)
    bv = b_ref[...].astype(jnp.float32)[None]
    if has_err:
        e = e_ref[...].astype(jnp.float32)
        xl, xu = x - e, x + e
    else:
        xl = xu = x

    # ---- real output: LayerNorm over the channel dim == F.layer_norm ----
    mu = jnp.mean(x, axis=-1, keepdims=True)           # (bb, T, 1)
    xc = x - mu
    var = jnp.mean(xc * xc, axis=-1, keepdims=True)
    y_ref[...] = (xc * lax.rsqrt(var + eps) * wv + bv).astype(y_ref.dtype)

    # ---- interval bounds: fast path (no error, no noise -> lo == hi) ----
    if (not has_err) and noise == 0.0:
        mean = jnp.mean(x, axis=(-2, -1), keepdims=True)        # (bb, 1, 1)
        d = x - mean
        var_g = jnp.mean(d * d, axis=(-2, -1), keepdims=True)
        lo = d * lax.rsqrt(var_g + eps) * wv + bv
        lo_ref[...] = lo.astype(lo_ref.dtype)
        if emit_hi:
            hi_ref[...] = lo.astype(hi_ref.dtype)
        return

    # ---- general interval-bound propagation over dims (-2, -1) ----
    mean_l = jnp.mean(xl, axis=(-2, -1), keepdims=True)
    mean_u = jnp.mean(xu, axis=(-2, -1), keepdims=True) if has_err else mean_l
    mean_lower = mean_l - noise
    mean_upper = mean_u + noise

    b_lo = xl - mean_upper          # minimal numerator (err>=0, noise>=0)
    c_hi = xu - mean_lower          # maximal numerator
    cmin = b_lo - noise
    cmax = c_hi + noise
    cmin_sq = cmin * cmin
    cmax_sq = cmax * cmax
    sq_lower = jnp.where((cmin <= 0.0) & (cmax >= 0.0), 0.0,
                         jnp.minimum(cmin_sq, cmax_sq))
    sq_upper = jnp.maximum(cmin_sq, cmax_sq)
    var_lower = jnp.mean(sq_lower, axis=(-2, -1), keepdims=True) - noise
    var_upper = jnp.mean(sq_upper, axis=(-2, -1), keepdims=True) + noise
    inv_dl = lax.rsqrt(var_lower + eps)                 # (bb, 1, 1)
    inv_du = lax.rsqrt(var_upper + eps)

    # Monotone collapse of the 8-way min/max (denom_lower <= denom_upper).
    lower_norm = b_lo * jnp.where(b_lo <= 0.0, inv_dl, inv_du) - noise
    upper_norm = c_hi * jnp.where(c_hi >= 0.0, inv_dl, inv_du) + noise

    w_pos = jnp.where(wv >= 0.0, wv, 0.0)
    w_neg = wv - w_pos
    lo_ref[...] = (lower_norm * w_pos + upper_norm * w_neg + bv - noise).astype(lo_ref.dtype)
    if emit_hi:
        hi_ref[...] = (upper_norm * w_pos + lower_norm * w_neg + bv + noise).astype(hi_ref.dtype)


# ---------------------------------------------------------------------------
# T-tiled three-phase kernel: grid (B, 3, T//tt) for planes too big for VMEM
# ---------------------------------------------------------------------------

def _ln_tiled_kernel(*refs, eps, noise, inv_n, has_err, emit_hi):
    if has_err:
        x_ref, e_ref, w_ref, b_ref = refs[:4]
        rest = refs[4:]
    else:
        x_ref, w_ref, b_ref = refs[:3]
        rest = refs[3:]
    n_out = 3 if emit_hi else 2
    out = rest[:n_out]
    s_l, s_u, q_l, q_u = rest[n_out:]      # (1,1,1) f32 scratch accumulators

    p = pl.program_id(1)
    t = pl.program_id(2)

    x = x_ref[...].astype(jnp.float32)                  # (1, tt, C)
    if has_err:
        e = e_ref[...].astype(jnp.float32)
        xl, xu = x - e, x + e
    else:
        xl = xu = x

    # ---- phase 0: accumulate sums for the (-2, -1) means ----
    @pl.when((p == 0) & (t == 0))
    def _():
        s_l[...] = jnp.zeros_like(s_l)
        s_u[...] = jnp.zeros_like(s_u)
        q_l[...] = jnp.zeros_like(q_l)
        q_u[...] = jnp.zeros_like(q_u)

    @pl.when(p == 0)
    def _():
        s_l[...] += jnp.sum(xl, axis=(-2, -1), keepdims=True)
        if has_err:
            s_u[...] += jnp.sum(xu, axis=(-2, -1), keepdims=True)

    # ---- phase 1: finalize mean bounds, accumulate squared-bound sums ----
    @pl.when((p == 1) & (t == 0))
    def _():
        sl = s_l[...] * inv_n
        su = (s_u[...] * inv_n) if has_err else sl
        s_l[...] = sl - noise                           # mean_lower
        s_u[...] = su + noise                           # mean_upper

    @pl.when(p == 1)
    def _():
        b_lo = xl - s_u[...]
        c_hi = xu - s_l[...]
        cmin = b_lo - noise
        cmax = c_hi + noise
        cmin_sq = cmin * cmin
        cmax_sq = cmax * cmax
        sq_lower = jnp.where((cmin <= 0.0) & (cmax >= 0.0), 0.0,
                             jnp.minimum(cmin_sq, cmax_sq))
        sq_upper = jnp.maximum(cmin_sq, cmax_sq)
        q_l[...] += jnp.sum(sq_lower, axis=(-2, -1), keepdims=True)
        q_u[...] += jnp.sum(sq_upper, axis=(-2, -1), keepdims=True)

    # ---- phase 2: finalize reciprocal denominators, write outputs ----
    @pl.when((p == 2) & (t == 0))
    def _():
        q_l[...] = lax.rsqrt(q_l[...] * inv_n - noise + eps)   # 1/denom_lower
        q_u[...] = lax.rsqrt(q_u[...] * inv_n + noise + eps)   # 1/denom_upper

    @pl.when(p == 2)
    def _():
        wv = w_ref[...].astype(jnp.float32)[None]        # (1, 1, C)
        bv = b_ref[...].astype(jnp.float32)[None]
        if emit_hi:
            y_ref, lo_ref, hi_ref = out
        else:
            (y_ref, lo_ref), hi_ref = out, None

        # real LayerNorm: per-row over C, local to this tile
        mu = jnp.mean(x, axis=-1, keepdims=True)
        xc = x - mu
        var = jnp.mean(xc * xc, axis=-1, keepdims=True)
        y_ref[...] = (xc * lax.rsqrt(var + eps) * wv + bv).astype(y_ref.dtype)

        inv_dl = q_l[...]
        inv_du = q_u[...]
        b_lo = xl - s_u[...]
        c_hi = xu - s_l[...]
        lower_norm = b_lo * jnp.where(b_lo <= 0.0, inv_dl, inv_du) - noise
        upper_norm = c_hi * jnp.where(c_hi >= 0.0, inv_dl, inv_du) + noise
        w_pos = jnp.where(wv >= 0.0, wv, 0.0)
        w_neg = wv - w_pos
        lo_ref[...] = (lower_norm * w_pos + upper_norm * w_neg + bv - noise).astype(lo_ref.dtype)
        if emit_hi:
            hi_ref[...] = (upper_norm * w_pos + lower_norm * w_neg + bv + noise).astype(hi_ref.dtype)


# ---------------------------------------------------------------------------
# Wrapper
# ---------------------------------------------------------------------------

def layer_norm_forward(x, weight, bias=None, input_error=None, operator_noise=0.0,
                       eps=1e-5, *, bounds_dtype=None, max_tile_rows=None):
    """Returns (x_layernorm, output_lower, output_upper) matching the torch module.

    bounds_dtype: optional narrower dtype for lo/hi (byte reduction on v5e);
                  note the rounding can make the interval unsound, default off.
    max_tile_rows: testing/override hook capping rows (bb*T or tt) per tile.
    """
    B, T, C = x.shape
    noise = float(operator_noise)
    assert noise >= 0.0, "operator_noise must be >= 0 (monotone bound collapse)"
    eps = float(eps)
    if bias is None:
        bias = jnp.zeros_like(weight)        # torch forward substitutes zeros
    w2 = weight.reshape(1, C)
    b2 = bias.reshape(1, C)

    has_err = input_error is not None        # input_error assumed >= 0 elementwise
    emit_hi = has_err or noise != 0.0
    y_sds = jax.ShapeDtypeStruct((B, T, C), x.dtype)
    bdt = x.dtype if bounds_dtype is None else bounds_dtype
    b_sds = jax.ShapeDtypeStruct((B, T, C), bdt)
    out_shape = (y_sds, b_sds, b_sds) if emit_hi else (y_sds, b_sds)

    # --- generation-aware VMEM / tile budgeting (streams + live f32 temps) ---
    io_itemsize = jnp.dtype(x.dtype).itemsize
    n_streams = (2 if has_err else 1) + (3 if emit_hi else 2)
    n_temps = 11 if has_err else (8 if emit_hi else 6)
    vmem_cap = _vmem_capacity_bytes()
    if vmem_cap >= 96 * 1024 * 1024:                    # v5e / v6e (128 MiB)
        vmem_limit = 96 * 1024 * 1024
    else:                                               # v7x (64 MiB per TC)
        vmem_limit = min(46 * 1024 * 1024, int(vmem_cap * 0.72))
    per_row = C * (n_streams * 2 * io_itemsize + n_temps * 4)
    max_rows = max(1, int(0.7 * vmem_limit) // per_row)
    if max_tile_rows is not None:
        max_rows = max(1, min(max_rows, int(max_tile_rows)))

    args = (x,) + ((input_error,) if has_err else ()) + (w2, b2)

    if T <= max_rows:
        # ---------------- single-pass path: whole (bb, T, C) plane ----------
        bb = _choose_bb(B, max(1, max_rows // T))
        grid = (B // bb,)
        act_spec = pl.BlockSpec((bb, T, C), lambda i: (i, 0, 0))
        par_spec = pl.BlockSpec((1, C), lambda i: (0, 0))
        in_specs = [act_spec] + ([act_spec] if has_err else []) + [par_spec, par_spec]
        out_specs = [act_spec] * (3 if emit_hi else 2)
        kernel = functools.partial(_ln_singlepass_kernel, eps=eps, noise=noise,
                                   has_err=has_err, emit_hi=emit_hi)
        outs = pl.pallas_call(
            kernel,
            out_shape=out_shape,
            grid_spec=pltpu.PrefetchScalarGridSpec(
                num_scalar_prefetch=0, grid=grid,
                in_specs=in_specs, out_specs=out_specs),
            compiler_params=pltpu.CompilerParams(
                dimension_semantics=("parallel",),
                vmem_limit_bytes=vmem_limit),
        )(*args)
    else:
        # ---------------- T-tiled three-phase path ---------------------------
        tt = _choose_tt(T, max_rows)
        nt = T // tt
        grid = (B, 3, nt)
        act_spec = pl.BlockSpec((1, tt, C), lambda i, p, t: (i, t, 0))
        par_spec = pl.BlockSpec((1, C), lambda i, p, t: (0, 0))
        # Outputs are only produced in phase 2; keep the block index constant
        # during phases 0/1 so no garbage tile is ever written back.
        out_spec = pl.BlockSpec((1, tt, C), lambda i, p, t: (i, t * (p // 2), 0))
        in_specs = [act_spec] + ([act_spec] if has_err else []) + [par_spec, par_spec]
        out_specs = [out_spec] * (3 if emit_hi else 2)
        kernel = functools.partial(_ln_tiled_kernel, eps=eps, noise=noise,
                                   inv_n=1.0 / float(T * C),
                                   has_err=has_err, emit_hi=emit_hi)
        outs = pl.pallas_call(
            kernel,
            out_shape=out_shape,
            grid_spec=pltpu.PrefetchScalarGridSpec(
                num_scalar_prefetch=0, grid=grid,
                in_specs=in_specs, out_specs=out_specs,
                scratch_shapes=[pltpu.VMEM((1, 1, 1), jnp.float32)] * 4),
            compiler_params=pltpu.CompilerParams(
                dimension_semantics=("parallel", "arbitrary", "arbitrary"),
                vmem_limit_bytes=vmem_limit),
        )(*args)

    if emit_hi:
        y, lo, hi = outs
    else:
        y, lo = outs
        hi = lo                      # identical on this path; dedup saves a stream
    return y, lo, hi


# ---------------------------------------------------------------------------
# Pure-JAX reference (transcription of the PyTorch forward, 8-candidate form)
# ---------------------------------------------------------------------------

def _reference(x, weight, bias, input_error=None, operator_noise=0.0, eps=1e-5):
    if input_error is None:
        xl, xu = x, x
    else:
        xl, xu = x - input_error, x + input_error
    if bias is None:
        bias = jnp.zeros_like(weight)
    n = operator_noise
    mean_lower = jnp.mean(xl, axis=(-2, -1), keepdims=True) - n
    mean_upper = jnp.mean(xu, axis=(-2, -1), keepdims=True) + n
    cmin = xl - mean_upper - n
    cmax = xu - mean_lower + n
    sq_lower = jnp.where((cmin <= 0) & (cmax >= 0), 0.0,
                         jnp.minimum(cmin ** 2, cmax ** 2))
    sq_upper = jnp.maximum(cmin ** 2, cmax ** 2)
    var_lower = jnp.mean(sq_lower, axis=(-2, -1), keepdims=True) - n
    var_upper = jnp.mean(sq_upper, axis=(-2, -1), keepdims=True) + n
    dl = jnp.sqrt(var_lower + eps)
    du = jnp.sqrt(var_upper + eps)
    cands = jnp.stack([(xl - mean_lower) / dl, (xl - mean_lower) / du,
                       (xl - mean_upper) / dl, (xl - mean_upper) / du,
                       (xu - mean_lower) / dl, (xu - mean_lower) / du,
                       (xu - mean_upper) / dl, (xu - mean_upper) / du], axis=0)
    ln = cands.min(axis=0) - n
    un = cands.max(axis=0) + n
    w = weight.reshape(1, 1, -1)
    b = bias.reshape(1, 1, -1)
    wp = w * (w >= 0)
    wn = w * (w < 0)
    out_lo = ln * wp + un * wn + b - n
    out_hi = un * wp + ln * wn + b + n
    mu = jnp.mean(x, axis=-1, keepdims=True)
    var = jnp.mean((x - mu) ** 2, axis=-1, keepdims=True)
    y = (x - mu) / jnp.sqrt(var + eps) * w + b
    return y, out_lo, out_hi


if __name__ == "__main__":
    B, T, C = 2, 8, 32  # batch, seq, hidden (ndim == C)
    key = jax.random.PRNGKey(0)
    kx, ke, kw, kx2, ke2 = jax.random.split(key, 5)
    x = jax.random.normal(kx, (B, T, C), dtype=jnp.float32)
    input_error = 0.01 * jnp.abs(jax.random.normal(ke, (B, T, C), dtype=jnp.float32))

    # Deterministic parameter init exactly as the module __init__.
    weight = jnp.ones((C,), dtype=jnp.float32)
    bias = jnp.zeros((C,), dtype=jnp.float32)

    def check(got, want):
        for g, w in zip(got, want):
            np.testing.assert_allclose(np.asarray(g), np.asarray(w),
                                       rtol=1e-5, atol=1e-5)

    # 1) default path: input_error=None, operator_noise=0 (dedup fast path)
    out = layer_norm_forward(x, weight, bias)
    jax.block_until_ready(out)
    check(out, _reference(x, weight, bias))

    # 2) input_error=None but nonzero operator_noise
    out = layer_norm_forward(x, weight, bias, operator_noise=1e-4)
    jax.block_until_ready(out)
    check(out, _reference(x, weight, bias, operator_noise=1e-4))

    # 3) general path: nonzero input_error and operator_noise
    out = layer_norm_forward(x, weight, bias,
                             input_error=input_error, operator_noise=1e-4)
    jax.block_until_ready(out)
    check(out, _reference(x, weight, bias,
                          input_error=input_error, operator_noise=1e-4))

    # 4) bias=None + a weight with negative entries (exercises the pos/neg split)
    w_rand = jax.random.normal(kw, (C,), dtype=jnp.float32)
    out = layer_norm_forward(x, w_rand, None,
                             input_error=input_error, operator_noise=1e-4)
    jax.block_until_ready(out)
    check(out, _reference(x, w_rand, None,
                          input_error=input_error, operator_noise=1e-4))

    # 5) forced T-tiled three-phase path (error + noise), small shapes
    T2 = 16
    x2 = jax.random.normal(kx2, (B, T2, C), dtype=jnp.float32)
    e2 = 0.01 * jnp.abs(jax.random.normal(ke2, (B, T2, C), dtype=jnp.float32))
    out = layer_norm_forward(x2, w_rand, bias, input_error=e2,
                             operator_noise=1e-4, max_tile_rows=8)
    jax.block_until_ready(out)
    check(out, _reference(x2, w_rand, bias, input_error=e2, operator_noise=1e-4))

    # 6) forced T-tiled path on the dedup fast case (no error, no noise)
    out = layer_norm_forward(x2, weight, bias, max_tile_rows=8)
    jax.block_until_ready(out)
    check(out, _reference(x2, weight, bias))

    print("KERNEL_OK")
</pallas_src>

<mosaic_0001>
module attributes {stable_mosaic.version = 11 : i64} {
  func.func @_ln_singlepass_kernel(%arg0: i32, %arg1: memref<1x8x32xf32, #tpu.memory_space<vmem>>, %arg2: memref<1x32xf32, #tpu.memory_space<vmem>>, %arg3: memref<1x32xf32, #tpu.memory_space<vmem>>, %arg4: memref<1x8x32xf32, #tpu.memory_space<vmem>>, %arg5: memref<1x8x32xf32, #tpu.memory_space<vmem>>) attributes {dimension_semantics = [#tpu.dimension_semantics<parallel>], iteration_bounds = array<i64: 2>, scalar_prefetch = 0 : i64, scratch_operands = 0 : i64, tpu.core_type = #tpu.core_type<tc>, window_params = [{transform_indices = @transform_0, window_bounds = array<i64: 1, 8, 32>}, {pipeline_mode = #tpu.pipeline_mode<synchronous>, transform_indices = @transform_1, window_bounds = array<i64: 1, 32>}, {pipeline_mode = #tpu.pipeline_mode<synchronous>, transform_indices = @transform_2, window_bounds = array<i64: 1, 32>}, {transform_indices = @transform_3, window_bounds = array<i64: 1, 8, 32>}, {transform_indices = @transform_4, window_bounds = array<i64: 1, 8, 32>}]} {
    %c0 = arith.constant 0 : index
    %c0_0 = arith.constant 0 : index
    %c0_1 = arith.constant 0 : index
    %0 = vector.load %arg1[%c0, %c0_0, %c0_1] : memref<1x8x32xf32, #tpu.memory_space<vmem>>, vector<1x8x32xf32>
    %c0_2 = arith.constant 0 : index
    %c0_3 = arith.constant 0 : index
    %1 = vector.load %arg2[%c0_2, %c0_3] : memref<1x32xf32, #tpu.memory_space<vmem>>, vector<1x32xf32>
    %2 = vector.shape_cast %1 : vector<1x32xf32> to vector<1x1x32xf32>
    %c0_4 = arith.constant 0 : index
    %c0_5 = arith.constant 0 : index
    %3 = vector.load %arg3[%c0_4, %c0_5] : memref<1x32xf32, #tpu.memory_space<vmem>>, vector<1x32xf32>
    %4 = vector.shape_cast %3 : vector<1x32xf32> to vector<1x1x32xf32>
    %cst = arith.constant dense<0.000000e+00> : vector<1x8xf32>
    %5 = vector.multi_reduction <add>, %0, %cst [2] : vector<1x8x32xf32> to vector<1x8xf32>
    %6 = vector.shape_cast %5 : vector<1x8xf32> to vector<1x8x1xf32>
    %cst_6 = arith.constant 3.200000e+01 : f32
    %7 = vector.broadcast %cst_6 : f32 to vector<1x8x1xf32>
    %8 = arith.divf %6, %7 : vector<1x8x1xf32>
    %9 = vector.broadcast %8 : vector<1x8x1xf32> to vector<1x8x32xf32>
    %10 = arith.subf %0, %9 : vector<1x8x32xf32>
    %11 = arith.mulf %10, %10 : vector<1x8x32xf32>
    %cst_7 = arith.constant dense<0.000000e+00> : vector<1x8xf32>
    %12 = vector.multi_reduction <add>, %11, %cst_7 [2] : vector<1x8x32xf32> to vector<1x8xf32>
    %13 = vector.shape_cast %12 : vector<1x8xf32> to vector<1x8x1xf32>
    %cst_8 = arith.constant 3.200000e+01 : f32
    %14 = vector.broadcast %cst_8 : f32 to vector<1x8x1xf32>
    %15 = arith.divf %13, %14 : vector<1x8x1xf32>
    %cst_9 = arith.constant 9.99999974E-6 : f32
    %16 = vector.broadcast %cst_9 : f32 to vector<1x8x1xf32>
    %17 = arith.addf %15, %16 : vector<1x8x1xf32>
    %18 = math.rsqrt %17 : vector<1x8x1xf32>
    %19 = vector.broadcast %18 : vector<1x8x1xf32> to vector<1x8x32xf32>
    %20 = arith.mulf %10, %19 : vector<1x8x32xf32>
    %21 = vector.broadcast %2 : vector<1x1x32xf32> to vector<1x8x32xf32>
    %22 = arith.mulf %20, %21 : vector<1x8x32xf32>
    %23 = vector.broadcast %4 : vector<1x1x32xf32> to vector<1x8x32xf32>
    %24 = arith.addf %22, %23 : vector<1x8x32xf32>
    %c0_10 = arith.constant 0 : index
    %c0_11 = arith.constant 0 : index
    %c0_12 = arith.constant 0 : index
    %25 = vector.load %arg4[%c0_10, %c0_11, %c0_12] : memref<1x8x32xf32, #tpu.memory_space<vmem>>, vector<1x8x32xf32>
    tpu.vector_store %arg4[%c0_10, %c0_11, %c0_12], %24 {strides = array<i32>} : memref<1x8x32xf32, #tpu.memory_space<vmem>>, vector<1x8x32xf32>,
    %cst_13 = arith.constant dense<0.000000e+00> : vector<1xf32>
    %26 = vector.multi_reduction <add>, %0, %cst_13 [1, 2] : vector<1x8x32xf32> to vector<1xf32>
    %27 = vector.shape_cast %26 : vector<1xf32> to vector<1x1x1xf32>
    %cst_14 = arith.constant 2.560000e+02 : f32
    %28 = vector.broadcast %cst_14 : f32 to vector<1x1x1xf32>
    %29 = arith.divf %27, %28 : vector<1x1x1xf32>
    %30 = vector.broadcast %29 : vector<1x1x1xf32> to vector<1x8x32xf32>
    %31 = arith.subf %0, %30 : vector<1x8x32xf32>
    %32 = arith.mulf %31, %31 : vector<1x8x32xf32>
    %cst_15 = arith.constant dense<0.000000e+00> : vector<1xf32>
    %33 = vector.multi_reduction <add>, %32, %cst_15 [1, 2] : vector<1x8x32xf32> to vector<1xf32>
    %34 = vector.shape_cast %33 : vector<1xf32> to vector<1x1x1xf32>
    %cst_16 = arith.constant 2.560000e+02 : f32
    %35 = vector.broadcast %cst_16 : f32 to vector<1x1x1xf32>
    %36 = arith.divf %34, %35 : vector<1x1x1xf32>
    %cst_17 = arith.constant 9.99999974E-6 : f32
    %37 = vector.broadcast %cst_17 : f32 to vector<1x1x1xf32>
    %38 = arith.addf %36, %37 : vector<1x1x1xf32>
    %39 = math.rsqrt %38 : vector<1x1x1xf32>
    %40 = vector.broadcast %39 : vector<1x1x1xf32> to vector<1x8x32xf32>
    %41 = arith.mulf %31, %40 : vector<1x8x32xf32>
    %42 = vector.broadcast %2 : vector<1x1x32xf32> to vector<1x8x32xf32>
    %43 = arith.mulf %41, %42 : vector<1x8x32xf32>
    %44 = vector.broadcast %4 : vector<1x1x32xf32> to vector<1x8x32xf32>
    %45 = arith.addf %43, %44 : vector<1x8x32xf32>
    %c0_18 = arith.constant 0 : index
    %c0_19 = arith.constant 0 : index
    %c0_20 = arith.constant 0 : index
    %46 = vector.load %arg5[%c0_18, %c0_19, %c0_20] : memref<1x8x32xf32, #tpu.memory_space<vmem>>, vector<1x8x32xf32>
    tpu.vector_store %arg5[%c0_18, %c0_19, %c0_20], %45 {strides = array<i32>} : memref<1x8x32xf32, #tpu.memory_space<vmem>>, vector<1x8x32xf32>,
    return
  }
  func.func @transform_0(%arg0: i32) -> (i32, i32, i32) {
    %c0_i32 = arith.constant 0 : i32
    %c0_i32_0 = arith.constant 0 : i32
    %c0_i32_1 = arith.constant 0 : i32
    return %arg0, %c0_i32, %c0_i32_0 : i32, i32, i32
  }
  func.func @transform_1(%arg0: i32) -> (i32, i32) {
    %c0_i32 = arith.constant 0 : i32
    %c0_i32_0 = arith.constant 0 : i32
    %c0_i32_1 = arith.constant 0 : i32
    return %c0_i32, %c0_i32_0 : i32, i32
  }
  func.func @transform_2(%arg0: i32) -> (i32, i32) {
    %c0_i32 = arith.constant 0 : i32
    %c0_i32_0 = arith.constant 0 : i32
    %c0_i32_1 = arith.constant 0 : i32
    return %c0_i32, %c0_i32_0 : i32, i32
  }
  func.func @transform_3(%arg0: i32) -> (i32, i32, i32) {
    %c0_i32 = arith.constant 0 : i32
    %c0_i32_0 = arith.constant 0 : i32
    %c0_i32_1 = arith.constant 0 : i32
    return %arg0, %c0_i32, %c0_i32_0 : i32, i32, i32
  }
  func.func @transform_4(%arg0: i32) -> (i32, i32, i32) {
    %c0_i32 = arith.constant 0 : i32
    %c0_i32_0 = arith.constant 0 : i32
    %c0_i32_1 = arith.constant 0 : i32
    return %arg0, %c0_i32, %c0_i32_0 : i32, i32, i32
  }
}

</mosaic_0001>

<llo_original>
// kernel: tpu_custom_call.1
$region0: #{tpu_custom_call.1}
  #allocation0 [shape = 'u32[]', space=smem, size = 0x4, offset = 0x4, fixed_abs, tag = 'smem constant byte address 0x4 - core index']
  #allocation1 [shape = 'u32[72,128]{1,0:T(1,128)}', space=vmem, size = 0x9000, scoped, tag = 'internal scratch']
  %s0 = inlined_call_operand.hbm [shape: f32[2,8,32], index: 0, kind: input, shape index: {}]
  %s1 = inlined_call_operand.hbm [shape: f32[1,32], index: 1, kind: input, shape index: {}]
  %s2 = inlined_call_operand.vmem [shape: f32[1,32], index: 2, kind: input, shape index: {}]
  %s3 = inlined_call_operand.hbm [shape: f32[2,8,32], index: 3, kind: output, shape index: {0}]
  %s4 = inlined_call_operand.hbm [shape: f32[2,8,32], index: 4, kind: output, shape index: {1}]
  %5 = xla_tuple %s3, %s4
  %s6 = sld [smem:[#allocation0]]
  $region61: #{tpu_custom_call.1} parent=0
    _
  %s8 = ssub.s32 1, %s6
  %s9 = scalar_select 0, %s8, %s6
  $region1: #{tpu_custom_call.1} parent=0
    #allocation2 [shape = 'u8[8192]{0}', space=vmem, size = 0x2000, scoped, tag = 'input window, operand 0']
    #allocation3 [shape = 's32[2]{0}', space=sflag, size = 0x8, scoped, tag = 'scoped memory for tpu_custom_call.1']
    #allocation4 [shape = 's32[2]{0}', space=sflag, size = 0x8, scoped, tag = 'scoped memory for tpu_custom_call.1']
    #allocation5 [shape = 'u8[512]{0}', space=vmem, size = 0x400, scoped, tag = 'input window, operand 1, single buffered']
    #allocation6 [shape = 's32[1]{0}', space=sflag, size = 0x4, scoped, tag = 'scoped memory for tpu_custom_call.1']
    #allocation7 [shape = 'u8[8192]{0}', space=vmem, size = 0x2000, scoped, tag = 'output window, operand 0']
    #allocation8 [shape = 'u8[8192]{0}', space=vmem, size = 0x2000, scoped, tag = 'output window, operand 1']
    #allocation9 [shape = 's32[2]{0}', space=sflag, size = 0x8, scoped, tag = 'scoped memory for tpu_custom_call.1']
    %10 = vsyncpa [#allocation3], 0
    %s11 = scalar_lea.sflag [#allocation3], 1
    %12 = vsyncpa %s11, 0
    %13 = vsyncpa [#allocation6], 0
    %14 = vsyncpa [#allocation4], 0
    %s15 = scalar_lea.sflag [#allocation4], 1
    %16 = vsyncpa %s15, 0
    %17 = vsyncpa [#allocation9], 0
    %s18 = scalar_lea.sflag [#allocation9], 1
    %19 = vsyncpa %s18, 0
    loop: start=0, step=1, limit=4
    $region2: #{tpu_custom_call.1} parent=1 // loop_pre_header
      _
    $region3: #{tpu_custom_call.1} parent=1 // loop_header
      %s21 = sphi 0, %s25
      %p22 = scmp.ge.s32.totalorder %s21, 4
      %s31 = sphi 0, %s33
      %s34 = sphi 0, %s31
      %s35 = sphi 0, %s34
      %s51 = sphi 0, %s35
      %s55 = sphi 0, %s55
      %s57 = sphi 0, %s55
      %s58 = sphi 0, %s57
      %s72 = sphi 0, %s58
      %s76 = sphi 0, %s76
      %s78 = sphi 0, %s76
      %s79 = sphi 0, %s78
      %s93 = sphi 0, %s79
      %s99 = sphi 0, %s101
      %s102 = sphi 0, %s99
      %s103 = sphi 0, %s102
      %s119 = sphi 0, %s103
      %s125 = sphi 0, %s127
      %s128 = sphi 0, %s125
      %s129 = sphi 0, %s128
      %s145 = sphi 0, %s129
    $region4: #{tpu_custom_call.1} parent=1 // loop_header_branch
      %24 = sbr.rel (%p22) target = $region8
    $region5: #{tpu_custom_call.1} parent=1 // loop_body
      %s26 = ssub.s32 %s21, 1
      %s27 = ssub.s32 %s21, 2
      %s28 = sadd.s32 %s21, 1
      %s29 = ssub.s32 %s21, %s28
      %p30 = scmp.eq.s32.totalorder %s29, 0
      %s32 = sadd.s32 %s31, 1
      %s33 = scalar_select %p30, %s31, %s32
      %p36 = pneg %p30
      %p37 = scmp.eq.s32.totalorder %s21, 1
      %p38 = por %p36, %p37
      %p39 = scmp.ne.s32.totalorder %s31, %s34
      %p40 = scmp.eq.s32.totalorder %s21, 0
      %p41 = por %p39, %p40
      %p42 = scmp.ne.s32.totalorder %s31, %s34
      %p43 = scmp.eq.s32.totalorder %s26, 1
      %p44 = por %p42, %p43
      %p45 = scmp.ne.s32.totalorder %s34, %s35
      %p46 = scmp.eq.s32.totalorder %s26, 0
      %p47 = por %p45, %p46
      %p48 = scmp.ne.s32.totalorder %s34, %s35
      %p49 = scmp.eq.s32.totalorder %s27, 1
      %p50 = por %p48, %p49
      %p52 = scmp.ne.s32.totalorder %s35, %s51
      %p53 = scmp.eq.s32.totalorder %s27, 0
      %p54 = por %p52, %p53
      %s56 = sadd.s32 %s55, 1
      %p59 = scmp.eq.s32.totalorder %s21, 1
      %p60 = scmp.ne.s32.totalorder %s55, %s57
      %p61 = scmp.eq.s32.totalorder %s21, 0
      %p62 = por %p60, %p61
      %p63 = scmp.ne.s32.totalorder %s55, %s57
      %p64 = scmp.eq.s32.totalorder %s26, 1
      %p65 = por %p63, %p64
      %p66 = scmp.ne.s32.totalorder %s57, %s58
      %p67 = scmp.eq.s32.totalorder %s26, 0
      %p68 = por %p66, %p67
      %p69 = scmp.ne.s32.totalorder %s57, %s58
      %p70 = scmp.eq.s32.totalorder %s27, 1
      %p71 = por %p69, %p70
      %p73 = scmp.ne.s32.totalorder %s58, %s72
      %p74 = scmp.eq.s32.totalorder %s27, 0
      %p75 = por %p73, %p74
      %s77 = sadd.s32 %s76, 1
      %p80 = scmp.eq.s32.totalorder %s21, 1
      %p81 = scmp.ne.s32.totalorder %s76, %s78
      %p82 = scmp.eq.s32.totalorder %s21, 0
      %p83 = por %p81, %p82
      %p84 = scmp.ne.s32.totalorder %s76, %s78
      %p85 = scmp.eq.s32.totalorder %s26, 1
      %p86 = por %p84, %p85
      %p87 = scmp.ne.s32.totalorder %s78, %s79
      %p88 = scmp.eq.s32.totalorder %s26, 0
      %p89 = por %p87, %p88
      %p90 = scmp.ne.s32.totalorder %s78, %s79
      %p91 = scmp.eq.s32.totalorder %s27, 1
      %p92 = por %p90, %p91
      %p94 = scmp.ne.s32.totalorder %s79, %s93
      %p95 = scmp.eq.s32.totalorder %s27, 0
      %p96 = por %p94, %p95
      %s97 = ssub.s32 %s21, %s28
      %p98 = scmp.eq.s32.totalorder %s97, 0
      %s100 = sadd.s32 %s99, 1
      %s101 = scalar_select %p98, %s99, %s100
      %p104 = pneg %p98
      %p105 = scmp.eq.s32.totalorder %s21, 1
      %p106 = por %p104, %p105
      %p107 = scmp.ne.s32.totalorder %s99, %s102
      %p108 = scmp.eq.s32.totalorder %s21, 0
      %p109 = por %p107, %p108
      %p110 = scmp.ne.s32.totalorder %s99, %s102
      %p111 = scmp.eq.s32.totalorder %s26, 1
      %p112 = por %p110, %p111
      %p113 = scmp.ne.s32.totalorder %s102, %s103
      %p114 = scmp.eq.s32.totalorder %s26, 0
      %p115 = por %p113, %p114
      %p116 = scmp.ne.s32.totalorder %s102, %s103
      %p117 = scmp.eq.s32.totalorder %s27, 1
      %p118 = por %p116, %p117
      %p120 = scmp.ne.s32.totalorder %s103, %s119
      %p121 = scmp.eq.s32.totalorder %s27, 0
      %p122 = por %p120, %p121
      %s123 = ssub.s32 %s21, %s28
      %p124 = scmp.eq.s32.totalorder %s123, 0
      %s126 = sadd.s32 %s125, 1
      %s127 = scalar_select %p124, %s125, %s126
      %p130 = pneg %p124
      %p131 = scmp.eq.s32.totalorder %s21, 1
      %p132 = por %p130, %p131
      %p133 = scmp.ne.s32.totalorder %s125, %s128
      %p134 = scmp.eq.s32.totalorder %s21, 0
      %p135 = por %p133, %p134
      %p136 = scmp.ne.s32.totalorder %s125, %s128
      %p137 = scmp.eq.s32.totalorder %s26, 1
      %p138 = por %p136, %p137
      %p139 = scmp.ne.s32.totalorder %s128, %s129
      %p140 = scmp.eq.s32.totalorder %s26, 0
      %p141 = por %p139, %p140
      %p142 = scmp.ne.s32.totalorder %s128, %s129
      %p143 = scmp.eq.s32.totalorder %s27, 1
      %p144 = por %p142, %p143
      %p146 = scmp.ne.s32.totalorder %s129, %s145
      %p147 = scmp.eq.s32.totalorder %s27, 0
      %p148 = por %p146, %p147
      %p149 = scmp.le.s32.totalorder 1, %s21
      %p150 = scmp.lt.s32.totalorder %s21, 3
      %p151 = pnand %p149, %p150
      %p152 = pneg %p151
      // Predicated region
      $region9: #{tpu_custom_call.1} parent=5 // pred_check
        _
      $region10: #{tpu_custom_call.1} parent=5 // pred_check_branch
        %154 = sbr.rel (%p151) target = $region12
      $region11: #{tpu_custom_call.1} parent=5 // pred_region
        %s155 = ssub.s32 %s21, 1
        // Predicated region
        $region13: #{tpu_custom_call.1} parent=11 // pred_check
          %p156 = pneg %p68
        $region14: #{tpu_custom_call.1} parent=11 // pred_check_branch
          %158 = sbr.rel (%p156) target = $region16
        $region15: #{tpu_custom_call.1} parent=11 // pred_region
          %160 = vsyncadd [#allocation6], 0
          %s162 = sshll.u32 %s1, 4
          %s163 = int_to_ptr.hbm [resolvable:$true] %s162
          %s164 = sshll.u32 [#allocation5], 4
          %s165 = int_to_ptr.vmem [resolvable:$true] %s164
          %167 = dma.hbm_to_vmem [thread:$0]  %s163, 16, %s165, [#allocation6]
        $region16: #{tpu_custom_call.1} parent=11 // pred_fallthru
          _
        // Predicated region
        $region17: #{tpu_custom_call.1} parent=11 // pred_check
          %p168 = pneg %p89
        $region18: #{tpu_custom_call.1} parent=11 // pred_check_branch
          %170 = sbr.rel (%p168) target = $region20
        $region19: #{tpu_custom_call.1} parent=11 // pred_region
          _
        $region20: #{tpu_custom_call.1} parent=11 // pred_fallthru
          _
      $region12: #{tpu_custom_call.1} parent=5 // pred_fallthru
        _
      %p171 = scmp.lt.s32.totalorder %s21, 2
      // Predicated region
      $region21: #{tpu_custom_call.1} parent=5 // pred_check
        %p172 = pneg %p171
      $region22: #{tpu_custom_call.1} parent=5 // pred_check_branch
        %174 = sbr.rel (%p172) target = $region24
      $region23: #{tpu_custom_call.1} parent=5 // pred_region
        // Predicated region
        $region25: #{tpu_custom_call.1} parent=23 // pred_check
          %p175 = pneg %p41
        $region26: #{tpu_custom_call.1} parent=23 // pred_check_branch
          %177 = sbr.rel (%p175) target = $region28
        $region27: #{tpu_custom_call.1} parent=23 // pred_region
          %s178 = sand.u32 %s31, 1
          %s179 = scalar_lea.sflag [#allocation3], %s178
          %s180 = sand.u32 %s31, 1
          %s181 = smul.addr %s180, 8
          %s182 = scalar_lea.vmem [#allocation2], %s181
          %184 = vsyncadd %s179, 0
          %s185 = smul.addr %s21, 8
          %s186 = scalar_lea.hbm %s0, %s185
          %s188 = sshll.u32 %s186, 4
          %s189 = int_to_ptr.hbm [resolvable:$true] %s188
          %s190 = sshll.u32 %s182, 4
          %s191 = int_to_ptr.vmem [resolvable:$true] %s190
          %193 = dma.hbm_to_vmem [thread:$0]  %s189, 128, %s191, %s179
        $region28: #{tpu_custom_call.1} parent=23 // pred_fallthru
          _
      $region24: #{tpu_custom_call.1} parent=5 // pred_fallthru
        _
      %p194 = scmp.le.s32.totalorder 1, %s21
      %p195 = scmp.lt.s32.totalorder %s21, 3
      %p196 = pnand %p194, %p195
      %p197 = pneg %p196
      // Predicated region
      $region29: #{tpu_custom_call.1} parent=5 // pred_check
        _
      $region30: #{tpu_custom_call.1} parent=5 // pred_check_branch
        %199 = sbr.rel (%p196) target = $region32
      $region31: #{tpu_custom_call.1} parent=5 // pred_region
        %s200 = ssub.s32 %s21, 1
        %s201 = sand.u32 %s34, 1
        %s202 = scalar_lea.sflag [#allocation3], %s201
        %s203 = sand.u32 %s34, 1
        %s204 = smul.addr %s203, 8
        %s205 = scalar_lea.vmem [#allocation2], %s204
        // Predicated region
        $region33: #{tpu_custom_call.1} parent=31 // pred_check
          %p206 = pneg %p47
        $region34: #{tpu_custom_call.1} parent=31 // pred_check_branch
          %208 = sbr.rel (%p206) target = $region36
        $region35: #{tpu_custom_call.1} parent=31 // pred_region
          %210 = dma.done %s202, 128
        $region36: #{tpu_custom_call.1} parent=31 // pred_fallthru
          _
        // Predicated region
        $region37: #{tpu_custom_call.1} parent=31 // pred_check
          %p211 = pneg %p68
        $region38: #{tpu_custom_call.1} parent=31 // pred_check_branch
          %213 = sbr.rel (%p211) target = $region40
        $region39: #{tpu_custom_call.1} parent=31 // pred_region
          %215 = dma.done [#allocation6], 16
        $region40: #{tpu_custom_call.1} parent=31 // pred_fallthru
          _
        %s216 = sand.u32 %s34, 1
        %s217 = scalar_lea.sflag [#allocation3], %s216
        %s218 = sand.u32 %s34, 1
        %s219 = smul.addr %s218, 8
        %s220 = scalar_lea.vmem [#allocation2], %s219
        %p221 = pneg %p47
        %p222 = pneg %p44
        %p223 = pneg %p68
        %p224 = pneg %p65
        %p225 = pneg %p89
        %p226 = pneg %p86
        %p227 = pneg %p115
        %p228 = pneg %p112
        %s229 = sand.u32 %s102, 1
        %s230 = scalar_lea.sflag [#allocation4], %s229
        %s231 = sand.u32 %s102, 1
        %s232 = smul.addr %s231, 8
        %s233 = scalar_lea.vmem [#allocation7], %s232
        %p234 = pneg %p141
        %p235 = pneg %p138
        %s236 = sand.u32 %s128, 1
        %s237 = scalar_lea.sflag [#allocation9], %s236
        %s238 = sand.u32 %s128, 1
        %s239 = smul.addr %s238, 8
        %s240 = scalar_lea.vmem [#allocation8], %s239
        %v241 = vld [vmem:[%s205] sm:$0xff]
        %v242 = vld [vmem:[#allocation5] sm:$0x1]
        %v243 = vld [vmem:[%s2] sm:$0x1]
        %vm244 = vcmask 261120
        %v245 = vsel %vm244, %v241, 0.0
        %246 = vadd.xlane.f32.xlu0 %v245
        %v247 = vpop.xlane.xlu0 %246
        %v248 = vrcp.pop 32.0
        %v249 = vmul.f32 32.0, %v248
        %v250 = vsub.f32 1.0, %v249
        %v251 = vmul.f32 %v248, %v250
        %v252 = vadd.f32 %v248, %v251
        %vm253 = vweird.f32 %v248
        %v254 = vsel %vm253, %v248, %v252
        %v255 = vmul.f32 %v247, %v254
        %v256 = vsub.f32 %v241, %v255
        %v257 = vmul.f32 %v256, %v256
        %v258 = vsel %vm244, %v257, 0.0
        %259 = vadd.xlane.f32.xlu0 %v258
        %v260 = vpop.xlane.xlu0 %259
        %v261 = vmul.f32 %v260, %v254
        %v262 = vadd.f32 %v261, 1e-05
        %v263 = vrsqrt.pop %v262
        %v264 = vmul.f32 %v263, %v262
        %v265 = vmul.f32 %v264, %v263
        %v266 = vmul.f32 0.5, %v265
        %v267 = vsub.f32 1.5, %v266
        %v268 = vmul.f32 %v263, %v267
        %vm269 = vweird.f32 %v262
        %vm270 = vweird.f32 %v263
        %vm271 = vmor %vm269, %vm270
        %v272 = vsel %vm271, %v263, %v268
        %v273 = vmul.f32 %v256, %v272
        %v275 = vperm.slane %v242, 0
        %v277 = vmul.f32 %v273, %v275
        %v279 = vperm.slane %v243, 0
        %v281 = vadd.f32 %v277, %v279
        %282 = vst.msk [vmem:[%s233] sm:$0xff] %vm244, %v281
        %v283 = vrot.slane %v247, 4
        %v284 = vadd.f32 %v247, %v283
        %v285 = vrot.slane %v284, 2
        %v286 = vadd.f32 %v284, %v285
        %v287 = vrot.slane %v286, 1
        %v288 = vadd.f32 %v286, %v287
        %v289 = vrcp.pop 256.0
        %v290 = vmul.f32 256.0, %v289
        %v291 = vsub.f32 1.0, %v290
        %v292 = vmul.f32 %v289, %v291
        %v293 = vadd.f32 %v289, %v292
        %vm294 = vweird.f32 %v289
        %v295 = vsel %vm294, %v289, %v293
        %v296 = vmul.f32 %v288, %v295
        %v297 = vsub.f32 %v241, %v296
        %v298 = vmul.f32 %v297, %v297
        %v299 = vsel %vm244, %v298, 0.0
        %300 = vadd.xlane.f32.xlu0 %v299
        %v301 = vpop.xlane.xlu0 %300
        %v302 = vrot.slane %v301, 4
        %v303 = vadd.f32 %v301, %v302
        %v304 = vrot.slane %v303, 2
        %v305 = vadd.f32 %v303, %v304
        %v306 = vrot.slane %v305, 1
        %v307 = vadd.f32 %v305, %v306
        %v308 = vmul.f32 %v307, %v295
        %v309 = vadd.f32 %v308, 1e-05
        %v310 = vrsqrt.pop %v309
        %v311 = vmul.f32 %v310, %v309
        %v312 = vmul.f32 %v311, %v310
        %v313 = vmul.f32 0.5, %v312
        %v314 = vsub.f32 1.5, %v313
        %v315 = vmul.f32 %v310, %v314
        %vm316 = vweird.f32 %v309
        %vm317 = vweird.f32 %v310
        %vm318 = vmor %vm316, %vm317
        %v319 = vsel %vm318, %v310, %v315
        %v320 = vmul.f32 %v297, %v319
        %v321 = vmul.f32 %v320, %v275
        %v322 = vadd.f32 %v321, %v279
        %323 = vst.msk [vmem:[%s240] sm:$0xff] %vm244, %v322
        %s324 = sand.u32 %s102, 1
        %s325 = scalar_lea.sflag [#allocation4], %s324
        %s326 = sand.u32 %s102, 1
        %s327 = smul.addr %s326, 8
        %s328 = scalar_lea.vmem [#allocation7], %s327
        %s329 = sand.u32 %s128, 1
        %s330 = scalar_lea.sflag [#allocation9], %s329
        %s331 = sand.u32 %s128, 1
        %s332 = smul.addr %s331, 8
        %s333 = scalar_lea.vmem [#allocation8], %s332
        // Predicated region
        $region41: #{tpu_custom_call.1} parent=31 // pred_check
          %p334 = pneg %p112
        $region42: #{tpu_custom_call.1} parent=31 // pred_check_branch
          %336 = sbr.rel (%p334) target = $region44
        $region43: #{tpu_custom_call.1} parent=31 // pred_region
          %338 = vsyncadd %s325, 0
          %s339 = smul.addr %s26, 8
          %s340 = scalar_lea.hbm %s3, %s339
          %s342 = sshll.u32 %s328, 4
          %s343 = int_to_ptr.vmem [resolvable:$true] %s342
          %s344 = sshll.u32 %s340, 4
          %s345 = int_to_ptr.hbm [resolvable:$true] %s344
          %347 = dma.vmem_to_hbm [thread:$0]  %s343, 128, %s345, %s325
        $region44: #{tpu_custom_call.1} parent=31 // pred_fallthru
          _
        // Predicated region
        $region45: #{tpu_custom_call.1} parent=31 // pred_check
          %p348 = pneg %p138
        $region46: #{tpu_custom_call.1} parent=31 // pred_check_branch
          %350 = sbr.rel (%p348) target = $region48
        $region47: #{tpu_custom_call.1} parent=31 // pred_region
          %352 = vsyncadd %s330, 0
          %s353 = smul.addr %s26, 8
          %s354 = scalar_lea.hbm %s4, %s353
          %s356 = sshll.u32 %s333, 4
          %s357 = int_to_ptr.vmem [resolvable:$true] %s356
          %s358 = sshll.u32 %s354, 4
          %s359 = int_to_ptr.hbm [resolvable:$true] %s358
          %361 = dma.vmem_to_hbm [thread:$0]  %s357, 128, %s359, %s330
        $region48: #{tpu_custom_call.1} parent=31 // pred_fallthru
          _
      $region32: #{tpu_custom_call.1} parent=5 // pred_fallthru
        _
      %p362 = scmp.le.s32.totalorder 2, %s21
      // Predicated region
      $region49: #{tpu_custom_call.1} parent=5 // pred_check
        %p363 = pneg %p362
      $region50: #{tpu_custom_call.1} parent=5 // pred_check_branch
        %365 = sbr.rel (%p363) target = $region52
      $region51: #{tpu_custom_call.1} parent=5 // pred_region
        %s366 = ssub.s32 %s21, 2
        // Predicated region
        $region53: #{tpu_custom_call.1} parent=51 // pred_check
          %p367 = pneg %p118
        $region54: #{tpu_custom_call.1} parent=51 // pred_check_branch
          %369 = sbr.rel (%p367) target = $region56
        $region55: #{tpu_custom_call.1} parent=51 // pred_region
          %s370 = sand.u32 %s103, 1
          %s371 = scalar_lea.sflag [#allocation4], %s370
          %s372 = sand.u32 %s103, 1
          %s373 = smul.addr %s372, 8
          %s374 = scalar_lea.vmem [#allocation7], %s373
          %376 = dma.done %s371, 128
        $region56: #{tpu_custom_call.1} parent=51 // pred_fallthru
          _
        // Predicated region
        $region57: #{tpu_custom_call.1} parent=51 // pred_check
          %p377 = pneg %p144
        $region58: #{tpu_custom_call.1} parent=51 // pred_check_branch
          %379 = sbr.rel (%p377) target = $region60
        $region59: #{tpu_custom_call.1} parent=51 // pred_region
          %s380 = sand.u32 %s129, 1
          %s381 = scalar_lea.sflag [#allocation9], %s380
          %s382 = sand.u32 %s129, 1
          %s383 = smul.addr %s382, 8
          %s384 = scalar_lea.vmem [#allocation8], %s383
          %386 = dma.done %s381, 128
        $region60: #{tpu_custom_call.1} parent=51 // pred_fallthru
          _
      $region52: #{tpu_custom_call.1} parent=5 // pred_fallthru
        _
    $region6: #{tpu_custom_call.1} parent=1 // loop_footer
      %s25 = sadd.s32 1, %s21
    $region7: #{tpu_custom_call.1} parent=1 // loop_footer_branch
      %20 = sbr.rel target = $region3
    $region8: #{tpu_custom_call.1} parent=1 // loop_exit
      _
    %387 = vsyncpa [#allocation3], 1
    %s388 = scalar_lea.sflag [#allocation3], 1
    %389 = vsyncpa %s388, 1
    %390 = vsyncpa [#allocation6], 1
    %391 = vsyncpa [#allocation4], 1
    %s392 = scalar_lea.sflag [#allocation4], 1
    %393 = vsyncpa %s392, 1
    %394 = vsyncpa [#allocation9], 1
    %s395 = scalar_lea.sflag [#allocation9], 1
    %396 = vsyncpa %s395, 1

</llo_original>
